<compile_context>
chip_gen: v7x
topology: tpu7x:2x2x1
jax: 0.10.0
libtpu: 0.0.40
codegen_flags: <defaults>
</compile_context>

<pallas_src>
import functools

import jax
import jax.numpy as jnp
from jax import lax
from jax.experimental import pallas as pl
from jax.experimental.pallas import tpu as pltpu


def spectral_conv_kernel(x_ref, w_ref, o_ref):
    # x_ref: (Cin, Kt); w_ref: (Cin*Cout, Kt); o_ref: (Cout, Kt)
    cin = x_ref.shape[0]
    cout, kt = o_ref.shape

    def mac(c, acc, *, dyn):
        start = pl.multiple_of(c * cout, cout) if dyn else c * cout
        xc = x_ref[pl.ds(c, 1), :].astype(jnp.float32)          # (1, Kt) sublane-bcast
        wc = w_ref[pl.ds(start, cout), :].astype(jnp.float32)   # (Cout, Kt)
        return acc + xc * wc

    acc0 = jnp.zeros((cout, kt), jnp.float32)
    if cin <= 16:
        # Small Cin: static unroll -> short chain of pure-VALU multiply-adds.
        acc = acc0
        for c in range(cin):
            acc = mac(c, acc, dyn=False)
    else:
        # Large Cin: bound vreg live ranges with a real loop (partial unroll).
        acc = lax.fori_loop(0, cin, functools.partial(mac, dyn=True), acc0, unroll=4)

    o_ref[...] = acc.astype(o_ref.dtype)


def _plan_tiling(K, Cin, Cout, w_item, x_item, o_item):
    """Pick (kt, padded K, grid steps, vmem_limit_bytes, triple_buffer_weight)."""
    vmem_cap = 64 << 20                         # conservative default (v7x per-TC)
    try:
        vmem_cap = int(pltpu.get_tpu_info().vmem_capacity_bytes)
    except Exception:
        pass
    budget = min(48 << 20, int(0.65 * vmem_cap))  # double-buffered working-set budget

    per_k = Cin * Cout * w_item + Cin * x_item + Cout * o_item

    def ws(kt_):                                 # double-buffered in/out blocks
        return 2 * kt_ * per_k

    if K <= 128 or (K % 128 != 0 and ws(K) <= budget):
        # Single full block (block shape == array shape is always legal, no pad).
        kt, Kp = K, K
    else:
        Kp = -(-K // 128) * 128                  # pad up only when we must tile
        divisors = [t for t in range(128, Kp + 1, 128)
                    if Kp % t == 0 and ws(t) <= budget]
        if not divisors:
            divisors = [128]

        # Tile policy (HBM-bound op):
        #  * >=2 grid steps (even count preferred) -> v7x 2-TC sharding + overlap,
        #  * kt >= 512 reaches the ~85%+ HBM-roofline regime,
        #  * once kt >= 512, prefer more steps (better pipeline fill) over bigger tiles.
        def score(t):
            steps_ = Kp // t
            return (steps_ >= 2,                       # multi-step
                    steps_ >= 2 and steps_ % 2 == 0,   # even step count
                    t <= max(512, Kp // 4),            # not needlessly huge
                    min(t, 512),                       # credit up to 512
                    -t)                                # then prefer more steps
        kt = max(divisors, key=score)

    steps = Kp // kt
    w_tile_bytes = Cin * Cout * kt * w_item
    triple_buffer = steps >= 4 and w_tile_bytes <= (2 << 20)

    need = ws(kt) + (w_tile_bytes if triple_buffer else 0)
    vmem_limit = max(32 << 20, int(1.5 * need) + (4 << 20))
    vmem_limit = min(vmem_limit, int(0.9 * vmem_cap))
    vmem_limit = max(vmem_limit, need + (2 << 20))
    return kt, Kp, steps, vmem_limit, triple_buffer


def spectral_conv(x_hat: jax.Array, weight: jax.Array, *,
                  out_dtype=None, transpose_output: bool = True) -> jax.Array:
    """Forward of gfno.SpectralConv.

    x_hat:  (K, Cin)
    weight: (Cin, Cout, K)  -- native PyTorch parameter layout. May be bfloat16:
            the kernel upcasts to f32 and accumulates in f32, so bf16 weights
            roughly halve HBM traffic (the op is bandwidth-bound).
    Returns (K, Cout) when transpose_output=True (PyTorch semantics), otherwise
    the kernel-native (Cout, K) so a downstream kernel can skip the extra pass.
    """
    Cin, Cout, K = weight.shape
    assert x_hat.shape == (K, Cin), (x_hat.shape, (K, Cin))
    out_dtype = jnp.dtype(x_hat.dtype if out_dtype is None else out_dtype)

    kt, Kp, steps, vmem_limit, triple_buffer = _plan_tiling(
        K, Cin, Cout,
        jnp.dtype(weight.dtype).itemsize,
        jnp.dtype(x_hat.dtype).itemsize,
        out_dtype.itemsize,
    )

    x_t = jnp.transpose(x_hat)                # (Cin, K): tiny; puts K on lanes
    w2 = weight.reshape(Cin * Cout, K)        # free row-major view of the weight
    if Kp != K:                               # one-time pad only when tiling a
        x_t = jnp.pad(x_t, ((0, 0), (0, Kp - K)))    # non-multiple-of-128 K
        w2 = jnp.pad(w2, ((0, 0), (0, Kp - K)))

    w_spec_kwargs = dict(pipeline_mode=pl.Buffered(3)) if triple_buffer else {}

    out_t = pl.pallas_call(
        spectral_conv_kernel,
        out_shape=jax.ShapeDtypeStruct((Cout, Kp), out_dtype),
        grid=(steps,),
        in_specs=[
            pl.BlockSpec((Cin, kt), lambda i: (0, i)),                       # x tile
            pl.BlockSpec((Cin * Cout, kt), lambda i: (0, i), **w_spec_kwargs),  # W tile
        ],
        out_specs=pl.BlockSpec((Cout, kt), lambda i: (0, i)),
        compiler_params=pltpu.CompilerParams(
            # Every K tile is independent -> shardable across v7x's 2 TensorCores.
            dimension_semantics=("parallel",),
            vmem_limit_bytes=vmem_limit,      # tied to the actual tile working set
        ),
    )(x_t, w2)

    if Kp != K:
        out_t = out_t[:, :K]
    return jnp.transpose(out_t) if transpose_output else out_t


def init_weight(key, Cin: int, Cout: int, K: int) -> jax.Array:
    # Xavier-uniform à la nn.init.xavier_uniform_ for a (Cin, Cout, K) tensor:
    # fan_in = Cout * K, fan_out = Cin * K.
    bound = (6.0 / (Cout * K + Cin * K)) ** 0.5
    return jax.random.uniform(key, (Cin, Cout, K), dtype=jnp.float32,
                              minval=-bound, maxval=bound)


if __name__ == "__main__":
    Cin, Cout, K = 8, 32, 512
    key = jax.random.PRNGKey(0)
    k_w, k_x = jax.random.split(key)
    weight = init_weight(k_w, Cin, Cout, K)                        # (Cin, Cout, K)
    x_hat = jax.random.normal(k_x, (K, Cin), dtype=jnp.float32)    # (K, Cin)

    hi = jax.lax.Precision.HIGHEST

    # 1) f32 path (tight check). Planner picks a multi-step, lane-dense K grid.
    out = jax.block_until_ready(spectral_conv(x_hat, weight))
    ref = jnp.einsum("kco,kc->ko", jnp.transpose(weight, (2, 0, 1)), x_hat,
                     precision=hi)
    assert out.shape == (K, Cout)
    assert jnp.allclose(out, ref, atol=1e-5, rtol=1e-5)

    # 2) bf16-through-HBM path (f32 accumulate in-kernel): ~2x less HBM traffic.
    w_bf = weight.astype(jnp.bfloat16)
    x_bf = x_hat.astype(jnp.bfloat16)
    out_bf = jax.block_until_ready(spectral_conv(x_bf, w_bf, out_dtype=jnp.float32))
    ref_bf = jnp.einsum("kco,kc->ko",
                        jnp.transpose(w_bf.astype(jnp.float32), (2, 0, 1)),
                        x_bf.astype(jnp.float32), precision=hi)
    assert jnp.allclose(out_bf, ref_bf, atol=1e-3, rtol=2e-2)

    # 3) K not a multiple of 128 (rfft-style mode count): full-block path.
    K2 = 200
    w_small = init_weight(k_w, Cin, Cout, K2)
    x_small = jax.random.normal(k_x, (K2, Cin), dtype=jnp.float32)
    out2 = jax.block_until_ready(spectral_conv(x_small, w_small))
    ref2 = jnp.einsum("kco,kc->ko", jnp.transpose(w_small, (2, 0, 1)), x_small,
                      precision=hi)
    assert jnp.allclose(out2, ref2, atol=1e-5, rtol=1e-5)

    print("KERNEL_OK")
</pallas_src>

<mosaic_0001>
module attributes {stable_mosaic.version = 11 : i64} {
  func.func @spectral_conv_kernel(%arg0: i32, %arg1: memref<8x256xf32, #tpu.memory_space<vmem>>, %arg2: memref<256x256xf32, #tpu.memory_space<vmem>>, %arg3: memref<32x256xf32, #tpu.memory_space<vmem>>) attributes {dimension_semantics = [#tpu.dimension_semantics<parallel>], iteration_bounds = array<i64: 2>, scalar_prefetch = 0 : i64, scratch_operands = 0 : i64, tpu.core_type = #tpu.core_type<tc>, window_params = [{transform_indices = @transform_0, window_bounds = array<i64: 8, 256>}, {transform_indices = @transform_1, window_bounds = array<i64: 256, 256>}, {transform_indices = @transform_2, window_bounds = array<i64: 32, 256>}]} {
    %cst = arith.constant 0.000000e+00 : f32
    %0 = vector.broadcast %cst : f32 to vector<32x256xf32>
    %c0 = arith.constant 0 : index
    %c0_0 = arith.constant 0 : index
    %1 = vector.load %arg1[%c0, %c0_0] : memref<8x256xf32, #tpu.memory_space<vmem>>, vector<1x256xf32>
    %c0_1 = arith.constant 0 : index
    %c0_2 = arith.constant 0 : index
    %2 = vector.load %arg2[%c0_1, %c0_2] : memref<256x256xf32, #tpu.memory_space<vmem>>, vector<32x256xf32>
    %3 = vector.broadcast %1 : vector<1x256xf32> to vector<32x256xf32>
    %4 = arith.mulf %3, %2 : vector<32x256xf32>
    %5 = arith.addf %0, %4 : vector<32x256xf32>
    %c1 = arith.constant 1 : index
    %c0_3 = arith.constant 0 : index
    %6 = vector.load %arg1[%c1, %c0_3] : memref<8x256xf32, #tpu.memory_space<vmem>>, vector<1x256xf32>
    %c32 = arith.constant 32 : index
    %c0_4 = arith.constant 0 : index
    %7 = vector.load %arg2[%c32, %c0_4] : memref<256x256xf32, #tpu.memory_space<vmem>>, vector<32x256xf32>
    %8 = vector.broadcast %6 : vector<1x256xf32> to vector<32x256xf32>
    %9 = arith.mulf %8, %7 : vector<32x256xf32>
    %10 = arith.addf %5, %9 : vector<32x256xf32>
    %c2 = arith.constant 2 : index
    %c0_5 = arith.constant 0 : index
    %11 = vector.load %arg1[%c2, %c0_5] : memref<8x256xf32, #tpu.memory_space<vmem>>, vector<1x256xf32>
    %c64 = arith.constant 64 : index
    %c0_6 = arith.constant 0 : index
    %12 = vector.load %arg2[%c64, %c0_6] : memref<256x256xf32, #tpu.memory_space<vmem>>, vector<32x256xf32>
    %13 = vector.broadcast %11 : vector<1x256xf32> to vector<32x256xf32>
    %14 = arith.mulf %13, %12 : vector<32x256xf32>
    %15 = arith.addf %10, %14 : vector<32x256xf32>
    %c3 = arith.constant 3 : index
    %c0_7 = arith.constant 0 : index
    %16 = vector.load %arg1[%c3, %c0_7] : memref<8x256xf32, #tpu.memory_space<vmem>>, vector<1x256xf32>
    %c96 = arith.constant 96 : index
    %c0_8 = arith.constant 0 : index
    %17 = vector.load %arg2[%c96, %c0_8] : memref<256x256xf32, #tpu.memory_space<vmem>>, vector<32x256xf32>
    %18 = vector.broadcast %16 : vector<1x256xf32> to vector<32x256xf32>
    %19 = arith.mulf %18, %17 : vector<32x256xf32>
    %20 = arith.addf %15, %19 : vector<32x256xf32>
    %c4 = arith.constant 4 : index
    %c0_9 = arith.constant 0 : index
    %21 = vector.load %arg1[%c4, %c0_9] : memref<8x256xf32, #tpu.memory_space<vmem>>, vector<1x256xf32>
    %c128 = arith.constant 128 : index
    %c0_10 = arith.constant 0 : index
    %22 = vector.load %arg2[%c128, %c0_10] : memref<256x256xf32, #tpu.memory_space<vmem>>, vector<32x256xf32>
    %23 = vector.broadcast %21 : vector<1x256xf32> to vector<32x256xf32>
    %24 = arith.mulf %23, %22 : vector<32x256xf32>
    %25 = arith.addf %20, %24 : vector<32x256xf32>
    %c5 = arith.constant 5 : index
    %c0_11 = arith.constant 0 : index
    %26 = vector.load %arg1[%c5, %c0_11] : memref<8x256xf32, #tpu.memory_space<vmem>>, vector<1x256xf32>
    %c160 = arith.constant 160 : index
    %c0_12 = arith.constant 0 : index
    %27 = vector.load %arg2[%c160, %c0_12] : memref<256x256xf32, #tpu.memory_space<vmem>>, vector<32x256xf32>
    %28 = vector.broadcast %26 : vector<1x256xf32> to vector<32x256xf32>
    %29 = arith.mulf %28, %27 : vector<32x256xf32>
    %30 = arith.addf %25, %29 : vector<32x256xf32>
    %c6 = arith.constant 6 : index
    %c0_13 = arith.constant 0 : index
    %31 = vector.load %arg1[%c6, %c0_13] : memref<8x256xf32, #tpu.memory_space<vmem>>, vector<1x256xf32>
    %c192 = arith.constant 192 : index
    %c0_14 = arith.constant 0 : index
    %32 = vector.load %arg2[%c192, %c0_14] : memref<256x256xf32, #tpu.memory_space<vmem>>, vector<32x256xf32>
    %33 = vector.broadcast %31 : vector<1x256xf32> to vector<32x256xf32>
    %34 = arith.mulf %33, %32 : vector<32x256xf32>
    %35 = arith.addf %30, %34 : vector<32x256xf32>
    %c7 = arith.constant 7 : index
    %c0_15 = arith.constant 0 : index
    %36 = vector.load %arg1[%c7, %c0_15] : memref<8x256xf32, #tpu.memory_space<vmem>>, vector<1x256xf32>
    %c224 = arith.constant 224 : index
    %c0_16 = arith.constant 0 : index
    %37 = vector.load %arg2[%c224, %c0_16] : memref<256x256xf32, #tpu.memory_space<vmem>>, vector<32x256xf32>
    %38 = vector.broadcast %36 : vector<1x256xf32> to vector<32x256xf32>
    %39 = arith.mulf %38, %37 : vector<32x256xf32>
    %40 = arith.addf %35, %39 : vector<32x256xf32>
    %c0_17 = arith.constant 0 : index
    %c0_18 = arith.constant 0 : index
    %41 = vector.load %arg3[%c0_17, %c0_18] : memref<32x256xf32, #tpu.memory_space<vmem>>, vector<32x256xf32>
    tpu.vector_store %arg3[%c0_17, %c0_18], %40 {strides = array<i32>} : memref<32x256xf32, #tpu.memory_space<vmem>>, vector<32x256xf32>,
    return
  }
  func.func @transform_0(%arg0: i32) -> (i32, i32) {
    %c0_i32 = arith.constant 0 : i32
    %c0_i32_0 = arith.constant 0 : i32
    return %c0_i32, %arg0 : i32, i32
  }
  func.func @transform_1(%arg0: i32) -> (i32, i32) {
    %c0_i32 = arith.constant 0 : i32
    %c0_i32_0 = arith.constant 0 : i32
    return %c0_i32, %arg0 : i32, i32
  }
  func.func @transform_2(%arg0: i32) -> (i32, i32) {
    %c0_i32 = arith.constant 0 : i32
    %c0_i32_0 = arith.constant 0 : i32
    return %c0_i32, %arg0 : i32, i32
  }
}

</mosaic_0001>

<llo_original>
// kernel: tpu_custom_call.1
$region0: #{tpu_custom_call.1}
  #allocation0 [shape = 'u32[]', space=smem, size = 0x4, offset = 0x4, fixed_abs, tag = 'smem constant byte address 0x4 - core index']
  #allocation1 [shape = 'u32[144,128]{1,0:T(1,128)}', space=vmem, size = 0x12000, scoped, tag = 'internal scratch']
  %s0 = inlined_call_operand.hbm [shape: f32[8,512], index: 0, kind: input, shape index: {}]
  %s1 = inlined_call_operand.hbm [shape: f32[256,512], index: 1, kind: input, shape index: {}]
  %s2 = inlined_call_operand.hbm [shape: f32[32,512], index: 2, kind: output, shape index: {}]
  %s3 = sld [smem:[#allocation0]]
  $region49: #{tpu_custom_call.1} parent=0
    _
  %s5 = ssub.s32 1, %s3
  %s6 = scalar_select 0, %s5, %s3
  $region1: #{tpu_custom_call.1} parent=0
    #allocation2 [shape = 'u8[16384]{0}', space=vmem, size = 0x4000, scoped, tag = 'input window, operand 0']
    #allocation3 [shape = 's32[2]{0}', space=sflag, size = 0x8, scoped, tag = 'scoped memory for tpu_custom_call.1']
    #allocation4 [shape = 's32[2]{0}', space=sflag, size = 0x8, scoped, tag = 'scoped memory for tpu_custom_call.1']
    #allocation5 [shape = 'u8[524288]{0}', space=vmem, size = 0x80000, scoped, tag = 'input window, operand 1']
    #allocation6 [shape = 's32[2]{0}', space=sflag, size = 0x8, scoped, tag = 'scoped memory for tpu_custom_call.1']
    #allocation7 [shape = 'u8[65536]{0}', space=vmem, size = 0x10000, scoped, tag = 'output window, operand 0']
    %7 = vsyncpa [#allocation3], 0
    %s8 = scalar_lea.sflag [#allocation3], 1
    %9 = vsyncpa %s8, 0
    %10 = vsyncpa [#allocation6], 0
    %s11 = scalar_lea.sflag [#allocation6], 1
    %12 = vsyncpa %s11, 0
    %13 = vsyncpa [#allocation4], 0
    %s14 = scalar_lea.sflag [#allocation4], 1
    %15 = vsyncpa %s14, 0
    loop: start=0, step=1, limit=4
    $region2: #{tpu_custom_call.1} parent=1 // loop_pre_header
      _
    $region3: #{tpu_custom_call.1} parent=1 // loop_header
      %s17 = sphi 0, %s21
      %p18 = scmp.ge.s32.totalorder %s17, 4
      %s27 = sphi 0, %s29
      %s30 = sphi 0, %s27
      %s31 = sphi 0, %s30
      %s47 = sphi 0, %s31
      %s53 = sphi 0, %s55
      %s56 = sphi 0, %s53
      %s57 = sphi 0, %s56
      %s73 = sphi 0, %s57
      %s79 = sphi 0, %s81
      %s82 = sphi 0, %s79
      %s83 = sphi 0, %s82
      %s99 = sphi 0, %s83
    $region4: #{tpu_custom_call.1} parent=1 // loop_header_branch
      %20 = sbr.rel (%p18) target = $region8
    $region5: #{tpu_custom_call.1} parent=1 // loop_body
      %s22 = ssub.s32 %s17, 1
      %s23 = ssub.s32 %s17, 2
      %s24 = sadd.s32 %s17, 1
      %s25 = ssub.s32 %s17, %s24
      %p26 = scmp.eq.s32.totalorder %s25, 0
      %s28 = sadd.s32 %s27, 1
      %s29 = scalar_select %p26, %s27, %s28
      %p32 = pneg %p26
      %p33 = scmp.eq.s32.totalorder %s17, 1
      %p34 = por %p32, %p33
      %p35 = scmp.ne.s32.totalorder %s27, %s30
      %p36 = scmp.eq.s32.totalorder %s17, 0
      %p37 = por %p35, %p36
      %p38 = scmp.ne.s32.totalorder %s27, %s30
      %p39 = scmp.eq.s32.totalorder %s22, 1
      %p40 = por %p38, %p39
      %p41 = scmp.ne.s32.totalorder %s30, %s31
      %p42 = scmp.eq.s32.totalorder %s22, 0
      %p43 = por %p41, %p42
      %p44 = scmp.ne.s32.totalorder %s30, %s31
      %p45 = scmp.eq.s32.totalorder %s23, 1
      %p46 = por %p44, %p45
      %p48 = scmp.ne.s32.totalorder %s31, %s47
      %p49 = scmp.eq.s32.totalorder %s23, 0
      %p50 = por %p48, %p49
      %s51 = ssub.s32 %s17, %s24
      %p52 = scmp.eq.s32.totalorder %s51, 0
      %s54 = sadd.s32 %s53, 1
      %s55 = scalar_select %p52, %s53, %s54
      %p58 = pneg %p52
      %p59 = scmp.eq.s32.totalorder %s17, 1
      %p60 = por %p58, %p59
      %p61 = scmp.ne.s32.totalorder %s53, %s56
      %p62 = scmp.eq.s32.totalorder %s17, 0
      %p63 = por %p61, %p62
      %p64 = scmp.ne.s32.totalorder %s53, %s56
      %p65 = scmp.eq.s32.totalorder %s22, 1
      %p66 = por %p64, %p65
      %p67 = scmp.ne.s32.totalorder %s56, %s57
      %p68 = scmp.eq.s32.totalorder %s22, 0
      %p69 = por %p67, %p68
      %p70 = scmp.ne.s32.totalorder %s56, %s57
      %p71 = scmp.eq.s32.totalorder %s23, 1
      %p72 = por %p70, %p71
      %p74 = scmp.ne.s32.totalorder %s57, %s73
      %p75 = scmp.eq.s32.totalorder %s23, 0
      %p76 = por %p74, %p75
      %s77 = ssub.s32 %s17, %s24
      %p78 = scmp.eq.s32.totalorder %s77, 0
      %s80 = sadd.s32 %s79, 1
      %s81 = scalar_select %p78, %s79, %s80
      %p84 = pneg %p78
      %p85 = scmp.eq.s32.totalorder %s17, 1
      %p86 = por %p84, %p85
      %p87 = scmp.ne.s32.totalorder %s79, %s82
      %p88 = scmp.eq.s32.totalorder %s17, 0
      %p89 = por %p87, %p88
      %p90 = scmp.ne.s32.totalorder %s79, %s82
      %p91 = scmp.eq.s32.totalorder %s22, 1
      %p92 = por %p90, %p91
      %p93 = scmp.ne.s32.totalorder %s82, %s83
      %p94 = scmp.eq.s32.totalorder %s22, 0
      %p95 = por %p93, %p94
      %p96 = scmp.ne.s32.totalorder %s82, %s83
      %p97 = scmp.eq.s32.totalorder %s23, 1
      %p98 = por %p96, %p97
      %p100 = scmp.ne.s32.totalorder %s83, %s99
      %p101 = scmp.eq.s32.totalorder %s23, 0
      %p102 = por %p100, %p101
      %p103 = scmp.le.s32.totalorder 1, %s17
      %p104 = scmp.lt.s32.totalorder %s17, 3
      %p105 = pnand %p103, %p104
      %p106 = pneg %p105
      // Predicated region
      $region9: #{tpu_custom_call.1} parent=5 // pred_check
        _
      $region10: #{tpu_custom_call.1} parent=5 // pred_check_branch
        %108 = sbr.rel (%p105) target = $region12
      $region11: #{tpu_custom_call.1} parent=5 // pred_region
        %s109 = ssub.s32 %s17, 1
      $region12: #{tpu_custom_call.1} parent=5 // pred_fallthru
        _
      %p110 = scmp.lt.s32.totalorder %s17, 2
      // Predicated region
      $region13: #{tpu_custom_call.1} parent=5 // pred_check
        %p111 = pneg %p110
      $region14: #{tpu_custom_call.1} parent=5 // pred_check_branch
        %113 = sbr.rel (%p111) target = $region16
      $region15: #{tpu_custom_call.1} parent=5 // pred_region
        // Predicated region
        $region17: #{tpu_custom_call.1} parent=15 // pred_check
          %p114 = pneg %p37
        $region18: #{tpu_custom_call.1} parent=15 // pred_check_branch
          %116 = sbr.rel (%p114) target = $region20
        $region19: #{tpu_custom_call.1} parent=15 // pred_region
          %s117 = sand.u32 %s27, 1
          %s118 = scalar_lea.sflag [#allocation3], %s117
          %s119 = sand.u32 %s27, 1
          %s120 = smul.addr %s119, 16
          %s121 = scalar_lea.vmem [#allocation2], %s120
          %s122 = smul.u32 2, %s17
          %s124 = ssub.s32 256, 256
          %125 = vsyncadd %s118, %s124
          %s126 = smul.addr %s122, 128
          %s127 = scalar_lea.hbm %s0, %s126
          %s129 = sshll.u32 %s121, 4
          %s130 = int_to_ptr.vmem [resolvable:$true] %s129
          %132 = dma.hbm_to_vmem [thread:$0]  %s127, 256, %s130, %s118
        $region20: #{tpu_custom_call.1} parent=15 // pred_fallthru
          _
        // Predicated region
        $region21: #{tpu_custom_call.1} parent=15 // pred_check
          %p133 = pneg %p63
        $region22: #{tpu_custom_call.1} parent=15 // pred_check_branch
          %135 = sbr.rel (%p133) target = $region24
        $region23: #{tpu_custom_call.1} parent=15 // pred_region
          %s136 = sand.u32 %s53, 1
          %s137 = scalar_lea.sflag [#allocation6], %s136
          %s138 = sand.u32 %s53, 1
          %s139 = smul.addr %s138, 512
          %s140 = scalar_lea.vmem [#allocation5], %s139
          %s141 = smul.u32 2, %s17
          %s143 = ssub.s32 8192, 8192
          %144 = vsyncadd %s137, %s143
          %s145 = smul.addr %s141, 128
          %s146 = scalar_lea.hbm %s1, %s145
          %s147 = sshll.u32 %s140, 4
          %s148 = int_to_ptr.vmem [resolvable:$true] %s147
          %153 = dma.hbm_to_vmem [thread:$0]  %s146, 8192, %s148, %s137, 512, 256, 16
        $region24: #{tpu_custom_call.1} parent=15 // pred_fallthru
          _
      $region16: #{tpu_custom_call.1} parent=5 // pred_fallthru
        _
      %p154 = scmp.le.s32.totalorder 1, %s17
      %p155 = scmp.lt.s32.totalorder %s17, 3
      %p156 = pnand %p154, %p155
      %p157 = pneg %p156
      // Predicated region
      $region25: #{tpu_custom_call.1} parent=5 // pred_check
        _
      $region26: #{tpu_custom_call.1} parent=5 // pred_check_branch
        %159 = sbr.rel (%p156) target = $region28
      $region27: #{tpu_custom_call.1} parent=5 // pred_region
        %s160 = ssub.s32 %s17, 1
        %s161 = sand.u32 %s30, 1
        %s162 = scalar_lea.sflag [#allocation3], %s161
        %s163 = sand.u32 %s30, 1
        %s164 = smul.addr %s163, 16
        %s165 = scalar_lea.vmem [#allocation2], %s164
        // Predicated region
        $region29: #{tpu_custom_call.1} parent=27 // pred_check
          %p166 = pneg %p43
        $region30: #{tpu_custom_call.1} parent=27 // pred_check_branch
          %168 = sbr.rel (%p166) target = $region32
        $region31: #{tpu_custom_call.1} parent=27 // pred_region
          %169 = dma.done %s162, 256
        $region32: #{tpu_custom_call.1} parent=27 // pred_fallthru
          _
        %s170 = sand.u32 %s56, 1
        %s171 = scalar_lea.sflag [#allocation6], %s170
        %s172 = sand.u32 %s56, 1
        %s173 = smul.addr %s172, 512
        %s174 = scalar_lea.vmem [#allocation5], %s173
        // Predicated region
        $region33: #{tpu_custom_call.1} parent=27 // pred_check
          %p175 = pneg %p69
        $region34: #{tpu_custom_call.1} parent=27 // pred_check_branch
          %177 = sbr.rel (%p175) target = $region36
        $region35: #{tpu_custom_call.1} parent=27 // pred_region
          %178 = dma.done %s171, 8192
        $region36: #{tpu_custom_call.1} parent=27 // pred_fallthru
          _
        %s179 = sand.u32 %s30, 1
        %s180 = scalar_lea.sflag [#allocation3], %s179
        %s181 = sand.u32 %s30, 1
        %s182 = smul.addr %s181, 16
        %s183 = scalar_lea.vmem [#allocation2], %s182
        %p184 = pneg %p43
        %p185 = pneg %p40
        %s186 = sand.u32 %s56, 1
        %s187 = scalar_lea.sflag [#allocation6], %s186
        %s188 = sand.u32 %s56, 1
        %s189 = smul.addr %s188, 512
        %s190 = scalar_lea.vmem [#allocation5], %s189
        %p191 = pneg %p69
        %p192 = pneg %p66
        %p193 = pneg %p95
        %p194 = pneg %p92
        %s195 = sand.u32 %s82, 1
        %s196 = scalar_lea.sflag [#allocation4], %s195
        %s197 = sand.u32 %s82, 1
        %s198 = smul.addr %s197, 64
        %s199 = scalar_lea.vmem [#allocation7], %s198
        %s200 = smul.u32 2, %s22
        %s201 = smul.u32 2, %s22
        %s202 = smul.u32 2, %s22
        %v203 = vld [vmem:[%s165] ss:$8 sm:$0x3]
        %v204 = vld [vmem:[%s174] sm:$0xff]
        %v205 = vld [vmem:[%s174 + $0x8] sm:$0xff]
        %v206 = vld [vmem:[%s174 + $0x10] sm:$0xff]
        %v207 = vld [vmem:[%s174 + $0x18] sm:$0xff]
        %v208 = vld [vmem:[%s174 + $0x20] sm:$0xff]
        %v209 = vld [vmem:[%s174 + $0x28] sm:$0xff]
        %v210 = vld [vmem:[%s174 + $0x30] sm:$0xff]
        %v211 = vld [vmem:[%s174 + $0x38] sm:$0xff]
        %v213 = vlaneseq
        %v214 = vshrl.u32 %v213, 7
        %v215 = vsub.s32 0, %v214
        %v216 = vrot.slane %v203, %v215
        %v217 = vlaneseq
        %v218 = vshrl.u32 %v217, 7
        %v219 = vsub.s32 1, %v218
        %v220 = vrot.slane %v203, %v219
        %v223 = vmul.f32 %v216, %v204
        %v224 = vmul.f32 %v220, %v205
        %v225 = vmul.f32 %v216, %v206
        %v226 = vmul.f32 %v220, %v207
        %v227 = vmul.f32 %v216, %v208
        %v228 = vmul.f32 %v220, %v209
        %v229 = vmul.f32 %v216, %v210
        %v230 = vmul.f32 %v220, %v211
        %v231 = vadd.f32 %v223, 0.0
        %v232 = vadd.f32 %v224, 0.0
        %v233 = vadd.f32 %v225, 0.0
        %v234 = vadd.f32 %v226, 0.0
        %v235 = vadd.f32 %v227, 0.0
        %v236 = vadd.f32 %v228, 0.0
        %v237 = vadd.f32 %v229, 0.0
        %v238 = vadd.f32 %v230, 0.0
        %s239 = scalar_lea.vmem %s165, 1 [#allocation2]
        %v240 = vld [vmem:[%s239] ss:$8 sm:$0x3]
        %v241 = vld [vmem:[%s174 + $0x40] sm:$0xff]
        %v242 = vld [vmem:[%s174 + $0x48] sm:$0xff]
        %v243 = vld [vmem:[%s174 + $0x50] sm:$0xff]
        %v244 = vld [vmem:[%s174 + $0x58] sm:$0xff]
        %v245 = vld [vmem:[%s174 + $0x60] sm:$0xff]
        %v246 = vld [vmem:[%s174 + $0x68] sm:$0xff]
        %v247 = vld [vmem:[%s174 + $0x70] sm:$0xff]
        %v248 = vld [vmem:[%s174 + $0x78] sm:$0xff]
        %v250 = vlaneseq
        %v251 = vshrl.u32 %v250, 7
        %v252 = vsub.s32 0, %v251
        %v253 = vrot.slane %v240, %v252
        %v254 = vlaneseq
        %v255 = vshrl.u32 %v254, 7
        %v256 = vsub.s32 1, %v255
        %v257 = vrot.slane %v240, %v256
        %v260 = vmul.f32 %v253, %v241
        %v261 = vmul.f32 %v257, %v242
        %v262 = vmul.f32 %v253, %v243
        %v263 = vmul.f32 %v257, %v244
        %v264 = vmul.f32 %v253, %v245
        %v265 = vmul.f32 %v257, %v246
        %v266 = vmul.f32 %v253, %v247
        %v267 = vmul.f32 %v257, %v248
        %v268 = vadd.f32 %v231, %v260
        %v269 = vadd.f32 %v232, %v261
        %v270 = vadd.f32 %v233, %v262
        %v271 = vadd.f32 %v234, %v263
        %v272 = vadd.f32 %v235, %v264
        %v273 = vadd.f32 %v236, %v265
        %v274 = vadd.f32 %v237, %v266
        %v275 = vadd.f32 %v238, %v267
        %s276 = scalar_lea.vmem %s165, 2 [#allocation2]
        %v277 = vld [vmem:[%s276] ss:$8 sm:$0x3]
        %v278 = vld [vmem:[%s174 + $0x80] sm:$0xff]
        %v279 = vld [vmem:[%s174 + $0x88] sm:$0xff]
        %v280 = vld [vmem:[%s174 + $0x90] sm:$0xff]
        %v281 = vld [vmem:[%s174 + $0x98] sm:$0xff]
        %v282 = vld [vmem:[%s174 + $0xa0] sm:$0xff]
        %v283 = vld [vmem:[%s174 + $0xa8] sm:$0xff]
        %v284 = vld [vmem:[%s174 + $0xb0] sm:$0xff]
        %v285 = vld [vmem:[%s174 + $0xb8] sm:$0xff]
        %v287 = vlaneseq
        %v288 = vshrl.u32 %v287, 7
        %v289 = vsub.s32 0, %v288
        %v290 = vrot.slane %v277, %v289
        %v291 = vlaneseq
        %v292 = vshrl.u32 %v291, 7
        %v293 = vsub.s32 1, %v292
        %v294 = vrot.slane %v277, %v293
        %v297 = vmul.f32 %v290, %v278
        %v298 = vmul.f32 %v294, %v279
        %v299 = vmul.f32 %v290, %v280
        %v300 = vmul.f32 %v294, %v281
        %v301 = vmul.f32 %v290, %v282
        %v302 = vmul.f32 %v294, %v283
        %v303 = vmul.f32 %v290, %v284
        %v304 = vmul.f32 %v294, %v285
        %v305 = vadd.f32 %v268, %v297
        %v306 = vadd.f32 %v269, %v298
        %v307 = vadd.f32 %v270, %v299
        %v308 = vadd.f32 %v271, %v300
        %v309 = vadd.f32 %v272, %v301
        %v310 = vadd.f32 %v273, %v302
        %v311 = vadd.f32 %v274, %v303
        %v312 = vadd.f32 %v275, %v304
        %s313 = scalar_lea.vmem %s165, 3 [#allocation2]
        %v314 = vld [vmem:[%s313] ss:$8 sm:$0x3]
        %v315 = vld [vmem:[%s174 + $0xc0] sm:$0xff]
        %v316 = vld [vmem:[%s174 + $0xc8] sm:$0xff]
        %v317 = vld [vmem:[%s174 + $0xd0] sm:$0xff]
        %v318 = vld [vmem:[%s174 + $0xd8] sm:$0xff]
        %v319 = vld [vmem:[%s174 + $0xe0] sm:$0xff]
        %v320 = vld [vmem:[%s174 + $0xe8] sm:$0xff]
        %v321 = vld [vmem:[%s174 + $0xf0] sm:$0xff]
        %v322 = vld [vmem:[%s174 + $0xf8] sm:$0xff]
        %v324 = vlaneseq
        %v325 = vshrl.u32 %v324, 7
        %v326 = vsub.s32 0, %v325
        %v327 = vrot.slane %v314, %v326
        %v328 = vlaneseq
        %v329 = vshrl.u32 %v328, 7
        %v330 = vsub.s32 1, %v329
        %v331 = vrot.slane %v314, %v330
        %v334 = vmul.f32 %v327, %v315
        %v335 = vmul.f32 %v331, %v316
        %v336 = vmul.f32 %v327, %v317
        %v337 = vmul.f32 %v331, %v318
        %v338 = vmul.f32 %v327, %v319
        %v339 = vmul.f32 %v331, %v320
        %v340 = vmul.f32 %v327, %v321
        %v341 = vmul.f32 %v331, %v322
        %v342 = vadd.f32 %v305, %v334
        %v343 = vadd.f32 %v306, %v335
        %v344 = vadd.f32 %v307, %v336
        %v345 = vadd.f32 %v308, %v337
        %v346 = vadd.f32 %v309, %v338
        %v347 = vadd.f32 %v310, %v339
        %v348 = vadd.f32 %v311, %v340
        %v349 = vadd.f32 %v312, %v341
        %s350 = scalar_lea.vmem %s165, 4 [#allocation2]
        %v351 = vld [vmem:[%s350] ss:$8 sm:$0x3]
        %v352 = vld [vmem:[%s174 + $0x100] sm:$0xff]
        %v353 = vld [vmem:[%s174 + $0x108] sm:$0xff]
        %v354 = vld [vmem:[%s174 + $0x110] sm:$0xff]
        %v355 = vld [vmem:[%s174 + $0x118] sm:$0xff]
        %v356 = vld [vmem:[%s174 + $0x120] sm:$0xff]
        %v357 = vld [vmem:[%s174 + $0x128] sm:$0xff]
        %v358 = vld [vmem:[%s174 + $0x130] sm:$0xff]
        %v359 = vld [vmem:[%s174 + $0x138] sm:$0xff]
        %v361 = vlaneseq
        %v362 = vshrl.u32 %v361, 7
        %v363 = vsub.s32 0, %v362
        %v364 = vrot.slane %v351, %v363
        %v365 = vlaneseq
        %v366 = vshrl.u32 %v365, 7
        %v367 = vsub.s32 1, %v366
        %v368 = vrot.slane %v351, %v367
        %v371 = vmul.f32 %v364, %v352
        %v372 = vmul.f32 %v368, %v353
        %v373 = vmul.f32 %v364, %v354
        %v374 = vmul.f32 %v368, %v355
        %v375 = vmul.f32 %v364, %v356
        %v376 = vmul.f32 %v368, %v357
        %v377 = vmul.f32 %v364, %v358
        %v378 = vmul.f32 %v368, %v359
        %v379 = vadd.f32 %v342, %v371
        %v380 = vadd.f32 %v343, %v372
        %v381 = vadd.f32 %v344, %v373
        %v382 = vadd.f32 %v345, %v374
        %v383 = vadd.f32 %v346, %v375
        %v384 = vadd.f32 %v347, %v376
        %v385 = vadd.f32 %v348, %v377
        %v386 = vadd.f32 %v349, %v378
        %s387 = scalar_lea.vmem %s165, 5 [#allocation2]
        %v388 = vld [vmem:[%s387] ss:$8 sm:$0x3]
        %v389 = vld [vmem:[%s174 + $0x140] sm:$0xff]
        %v390 = vld [vmem:[%s174 + $0x148] sm:$0xff]
        %v391 = vld [vmem:[%s174 + $0x150] sm:$0xff]
        %v392 = vld [vmem:[%s174 + $0x158] sm:$0xff]
        %v393 = vld [vmem:[%s174 + $0x160] sm:$0xff]
        %v394 = vld [vmem:[%s174 + $0x168] sm:$0xff]
        %v395 = vld [vmem:[%s174 + $0x170] sm:$0xff]
        %v396 = vld [vmem:[%s174 + $0x178] sm:$0xff]
        %v398 = vlaneseq
        %v399 = vshrl.u32 %v398, 7
        %v400 = vsub.s32 0, %v399
        %v401 = vrot.slane %v388, %v400
        %v402 = vlaneseq
        %v403 = vshrl.u32 %v402, 7
        %v404 = vsub.s32 1, %v403
        %v405 = vrot.slane %v388, %v404
        %v408 = vmul.f32 %v401, %v389
        %v409 = vmul.f32 %v405, %v390
        %v410 = vmul.f32 %v401, %v391
        %v411 = vmul.f32 %v405, %v392
        %v412 = vmul.f32 %v401, %v393
        %v413 = vmul.f32 %v405, %v394
        %v414 = vmul.f32 %v401, %v395
        %v415 = vmul.f32 %v405, %v396
        %v416 = vadd.f32 %v379, %v408
        %v417 = vadd.f32 %v380, %v409
        %v418 = vadd.f32 %v381, %v410
        %v419 = vadd.f32 %v382, %v411
        %v420 = vadd.f32 %v383, %v412
        %v421 = vadd.f32 %v384, %v413
        %v422 = vadd.f32 %v385, %v414
        %v423 = vadd.f32 %v386, %v415
        %s424 = scalar_lea.vmem %s165, 6 [#allocation2]
        %v425 = vld [vmem:[%s424] ss:$8 sm:$0x3]
        %v426 = vld [vmem:[%s174 + $0x180] sm:$0xff]
        %v427 = vld [vmem:[%s174 + $0x188] sm:$0xff]
        %v428 = vld [vmem:[%s174 + $0x190] sm:$0xff]
        %v429 = vld [vmem:[%s174 + $0x198] sm:$0xff]
        %v430 = vld [vmem:[%s174 + $0x1a0] sm:$0xff]
        %v431 = vld [vmem:[%s174 + $0x1a8] sm:$0xff]
        %v432 = vld [vmem:[%s174 + $0x1b0] sm:$0xff]
        %v433 = vld [vmem:[%s174 + $0x1b8] sm:$0xff]
        %v435 = vlaneseq
        %v436 = vshrl.u32 %v435, 7
        %v437 = vsub.s32 0, %v436
        %v438 = vrot.slane %v425, %v437
        %v439 = vlaneseq
        %v440 = vshrl.u32 %v439, 7
        %v441 = vsub.s32 1, %v440
        %v442 = vrot.slane %v425, %v441
        %v445 = vmul.f32 %v438, %v426
        %v446 = vmul.f32 %v442, %v427
        %v447 = vmul.f32 %v438, %v428
        %v448 = vmul.f32 %v442, %v429
        %v449 = vmul.f32 %v438, %v430
        %v450 = vmul.f32 %v442, %v431
        %v451 = vmul.f32 %v438, %v432
        %v452 = vmul.f32 %v442, %v433
        %v453 = vadd.f32 %v416, %v445
        %v454 = vadd.f32 %v417, %v446
        %v455 = vadd.f32 %v418, %v447
        %v456 = vadd.f32 %v419, %v448
        %v457 = vadd.f32 %v420, %v449
        %v458 = vadd.f32 %v421, %v450
        %v459 = vadd.f32 %v422, %v451
        %v460 = vadd.f32 %v423, %v452
        %s461 = scalar_lea.vmem %s165, 7 [#allocation2]
        %v462 = vld [vmem:[%s461] ss:$8 sm:$0x3]
        %v463 = vld [vmem:[%s174 + $0x1c0] sm:$0xff]
        %v464 = vld [vmem:[%s174 + $0x1c8] sm:$0xff]
        %v465 = vld [vmem:[%s174 + $0x1d0] sm:$0xff]
        %v466 = vld [vmem:[%s174 + $0x1d8] sm:$0xff]
        %v467 = vld [vmem:[%s174 + $0x1e0] sm:$0xff]
        %v468 = vld [vmem:[%s174 + $0x1e8] sm:$0xff]
        %v469 = vld [vmem:[%s174 + $0x1f0] sm:$0xff]
        %v470 = vld [vmem:[%s174 + $0x1f8] sm:$0xff]
        %v472 = vlaneseq
        %v473 = vshrl.u32 %v472, 7
        %v474 = vsub.s32 0, %v473
        %v475 = vrot.slane %v462, %v474
        %v476 = vlaneseq
        %v477 = vshrl.u32 %v476, 7
        %v478 = vsub.s32 1, %v477
        %v479 = vrot.slane %v462, %v478
        %v482 = vmul.f32 %v475, %v463
        %v483 = vmul.f32 %v479, %v464
        %v484 = vmul.f32 %v475, %v465
        %v485 = vmul.f32 %v479, %v466
        %v486 = vmul.f32 %v475, %v467
        %v487 = vmul.f32 %v479, %v468
        %v488 = vmul.f32 %v475, %v469
        %v489 = vmul.f32 %v479, %v470
        %v490 = vadd.f32 %v453, %v482
        %v491 = vadd.f32 %v454, %v483
        %v492 = vadd.f32 %v455, %v484
        %v493 = vadd.f32 %v456, %v485
        %v494 = vadd.f32 %v457, %v486
        %v495 = vadd.f32 %v458, %v487
        %v496 = vadd.f32 %v459, %v488
        %v497 = vadd.f32 %v460, %v489
        %498 = vst [vmem:[%s199] sm:$0xff] %v490
        %499 = vst [vmem:[%s199 + $0x8] sm:$0xff] %v491
        %500 = vst [vmem:[%s199 + $0x10] sm:$0xff] %v492
        %501 = vst [vmem:[%s199 + $0x18] sm:$0xff] %v493
        %502 = vst [vmem:[%s199 + $0x20] sm:$0xff] %v494
        %503 = vst [vmem:[%s199 + $0x28] sm:$0xff] %v495
        %504 = vst [vmem:[%s199 + $0x30] sm:$0xff] %v496
        %505 = vst [vmem:[%s199 + $0x38] sm:$0xff] %v497
        %s506 = sand.u32 %s82, 1
        %s507 = scalar_lea.sflag [#allocation4], %s506
        %s508 = sand.u32 %s82, 1
        %s509 = smul.addr %s508, 64
        %s510 = scalar_lea.vmem [#allocation7], %s509
        // Predicated region
        $region37: #{tpu_custom_call.1} parent=27 // pred_check
          %p511 = pneg %p92
        $region38: #{tpu_custom_call.1} parent=27 // pred_check_branch
          %513 = sbr.rel (%p511) target = $region40
        $region39: #{tpu_custom_call.1} parent=27 // pred_region
          %s514 = smul.u32 2, %s22
          %s516 = ssub.s32 1024, 1024
          %517 = vsyncadd %s507, %s516
          %s518 = smul.addr %s514, 128
          %s519 = scalar_lea.hbm %s2, %s518
          %s520 = sshll.u32 %s510, 4
          %s521 = int_to_ptr.vmem [resolvable:$true] %s520
          %526 = dma.vmem_to_hbm [thread:$0]  %s521, 1024, %s519, %s507, 256, 512, 16
        $region40: #{tpu_custom_call.1} parent=27 // pred_fallthru
          _
      $region28: #{tpu_custom_call.1} parent=5 // pred_fallthru
        _
      %p527 = scmp.le.s32.totalorder 2, %s17
      // Predicated region
      $region41: #{tpu_custom_call.1} parent=5 // pred_check
        %p528 = pneg %p527
      $region42: #{tpu_custom_call.1} parent=5 // pred_check_branch
        %530 = sbr.rel (%p528) target = $region44
      $region43: #{tpu_custom_call.1} parent=5 // pred_region
        %s531 = ssub.s32 %s17, 2
        // Predicated region
        $region45: #{tpu_custom_call.1} parent=43 // pred_check
          %p532 = pneg %p98
        $region46: #{tpu_custom_call.1} parent=43 // pred_check_branch
          %534 = sbr.rel (%p532) target = $region48
        $region47: #{tpu_custom_call.1} parent=43 // pred_region
          %s535 = sand.u32 %s83, 1
          %s536 = scalar_lea.sflag [#allocation4], %s535
          %s537 = sand.u32 %s83, 1
          %s538 = smul.addr %s537, 64
          %s539 = scalar_lea.vmem [#allocation7], %s538
          %540 = dma.done %s536, 1024
        $region48: #{tpu_custom_call.1} parent=43 // pred_fallthru
          _
      $region44: #{tpu_custom_call.1} parent=5 // pred_fallthru
        _
    $region6: #{tpu_custom_call.1} parent=1 // loop_footer
      %s21 = sadd.s32 1, %s17
    $region7: #{tpu_custom_call.1} parent=1 // loop_footer_branch
      %16 = sbr.rel target = $region3
    $region8: #{tpu_custom_call.1} parent=1 // loop_exit
      _
    %541 = vsyncpa [#allocation3], 1
    %s542 = scalar_lea.sflag [#allocation3], 1
    %543 = vsyncpa %s542, 1
    %544 = vsyncpa [#allocation6], 1
    %s545 = scalar_lea.sflag [#allocation6], 1
    %546 = vsyncpa %s545, 1
    %547 = vsyncpa [#allocation4], 1
    %s548 = scalar_lea.sflag [#allocation4], 1
    %549 = vsyncpa %s548, 1

</llo_original>
